<compile_context>
chip_gen: v7x
topology: tpu7x:2x2x1
jax: 0.10.0
libtpu: 0.0.40
codegen_flags: <defaults>
</compile_context>

<pallas_src>
import functools
import math

import jax
import jax.numpy as jnp
from jax import lax
from jax.experimental import pallas as pl
from jax.experimental.pallas import tpu as pltpu


def _dot_t(a, b):
    """a @ b.T without materializing a transpose: contract last dims on the MXU."""
    return lax.dot_general(a, b, (((1,), (1,)), ((), ())),
                           preferred_element_type=jnp.float32)


def _qkv_proj_kernel(x_ref, w_attn_ref, b_attn_ref, q_ref, k_ref, v_ref, *, n_head):
    x = x_ref[0]                                      # (tsq, E), input dtype (no upcast)
    E = x.shape[-1]
    D = E // n_head
    scale = 1.0 / math.sqrt(D)

    # qkv = x @ W_attn^T + b_attn  (weights in torch Linear (out,in) layout)
    qkv = _dot_t(x, w_attn_ref[...]) + b_attn_ref[...].astype(jnp.float32)  # (tsq, 3E) f32

    q_ref[0] = (qkv[:, :E] * scale).astype(q_ref.dtype)   # fold 1/sqrt(D) into Q
    k_ref[0] = qkv[:, E:2 * E].astype(k_ref.dtype)
    v_ref[0] = qkv[:, 2 * E:].astype(v_ref.dtype)


def _flash_attn_proj_kernel(q_ref, k_ref, v_ref, w_proj_ref, b_proj_ref, o_ref,
                            m_sc, l_sc, acc_sc, attn_sc, *, n_head, tq, tk):
    qi = pl.program_id(1)
    ki = pl.program_id(2)
    nk = pl.num_programs(2)

    E = q_ref.shape[-1]
    D = E // n_head
    neg_inf = jnp.float32(-1e30)

    @pl.when(ki == 0)
    def _init():
        m_sc[...] = jnp.full(m_sc.shape, -jnp.inf, jnp.float32)
        l_sc[...] = jnp.zeros(l_sc.shape, jnp.float32)
        acc_sc[...] = jnp.zeros(acc_sc.shape, jnp.float32)

    def _update(masked):
        q = q_ref[0]                                  # (tq, E), already * 1/sqrt(D)
        k = k_ref[0]                                  # (tk, E)
        v = v_ref[0]                                  # (tk, E)

        if masked:
            # tile-local causal mask, built once and shared across heads
            row = qi * tq + lax.broadcasted_iota(jnp.int32, (tq, tk), 0)
            col = ki * tk + lax.broadcasted_iota(jnp.int32, (tq, tk), 1)
            mask = col <= row

        for h in range(n_head):                       # static unroll (n_head small)
            lo, hi = h * D, (h + 1) * D
            qh, kh, vh = q[:, lo:hi], k[:, lo:hi], v[:, lo:hi]

            s = _dot_t(qh, kh)                        # (tq, tk) f32, K untransposed
            if masked:
                s = jnp.where(mask, s, neg_inf)

            m_old = m_sc[h]                           # (tq, 1)
            m_new = jnp.maximum(m_old, jnp.max(s, axis=-1, keepdims=True))
            alpha = jnp.exp(m_old - m_new)            # (tq, 1)
            p = jnp.exp(s - m_new)                    # unnormalized probabilities

            l_sc[h] = alpha * l_sc[h] + jnp.sum(p, axis=-1, keepdims=True)
            m_sc[h] = m_new

            pv = lax.dot_general(p.astype(v.dtype), vh, (((1,), (0,)), ((), ())),
                                 preferred_element_type=jnp.float32)   # (tq, D)
            # leading-axis scratch write: no lane-offset read-modify-write
            acc_sc[h] = alpha * acc_sc[h] + pv

    # Strictly-past kv tiles: no masking work at all.
    @pl.when(ki < qi)
    def _full_tile():
        _update(masked=False)

    # Diagonal kv tile: causal mask applied; every row keeps >= 1 column, so the
    # online-softmax numerics stay safe. Strictly-future tiles (ki > qi) are skipped.
    @pl.when(ki == qi)
    def _diag_tile():
        _update(masked=True)

    @pl.when(ki == nk - 1)
    def _finalize():
        # deferred softmax normalization: scale the (tq, D) head outputs, not the
        # probabilities, and assemble the lane-dense (tq, E) attn tile exactly once
        for h in range(n_head):
            lo, hi = h * D, (h + 1) * D
            attn_sc[:, lo:hi] = acc_sc[h] * pl.reciprocal(l_sc[h], approx=True)
        attn = attn_sc[...].astype(w_proj_ref.dtype)   # (tq, E)
        # fused output projection: attn @ W_proj^T + b_proj, W untransposed
        y = _dot_t(attn, w_proj_ref[...]) + b_proj_ref[...].astype(jnp.float32)
        o_ref[0] = y.astype(o_ref.dtype)


def masked_mhsa_block(x, w_attn, b_attn, w_proj, b_proj, n_head, *, seq_tile=256):
    """x: (B, S, E); weights in torch.nn.Linear (out, in) layout.

    seq_tile=256 keeps double-buffering alive within v7x's 64 MiB VMEM; on
    v5e/v6e (128 MiB) a larger tile (512-1024) can be passed.
    """
    B, S, E = x.shape
    assert E % n_head == 0
    D = E // n_head
    dtype = x.dtype
    itemsize = jnp.dtype(dtype).itemsize

    # single tile size for q and kv tiles (keeps the causal tile-skip exact)
    tq = min(S, seq_tile)
    assert S % tq == 0, "seq_len must be a multiple of the sequence tile"
    nq = S // tq

    b_attn2 = b_attn.reshape(1, 3 * E)
    b_proj2 = b_proj.reshape(1, E)

    # ---- kernel 1: fused qkv projection -------------------------------------
    xqkv_spec = pl.BlockSpec((1, tq, E), lambda b, i: (b, i, 0))
    qkv_cost = pl.CostEstimate(
        flops=2 * B * S * E * 3 * E,
        transcendentals=0,
        bytes_accessed=itemsize * 4 * B * S * E + 4 * (3 * E * E + 3 * E))
    q, k, v = pl.pallas_call(
        functools.partial(_qkv_proj_kernel, n_head=n_head),
        out_shape=(jax.ShapeDtypeStruct((B, S, E), dtype),) * 3,
        grid=(B, nq),
        in_specs=[
            xqkv_spec,                                          # x tile
            pl.BlockSpec((3 * E, E), lambda b, i: (0, 0)),      # W_attn (whole)
            pl.BlockSpec((1, 3 * E), lambda b, i: (0, 0)),      # b_attn
        ],
        out_specs=(xqkv_spec,) * 3,
        compiler_params=pltpu.CompilerParams(
            dimension_semantics=("parallel", "parallel"),
            vmem_limit_bytes=64 * 1024 * 1024),
        cost_estimate=qkv_cost,
    )(x, w_attn, b_attn2)

    # ---- kernel 2: flash attention + fused output projection ----------------
    def kv_index_map(b, qi, ki):
        # Strictly-future kv tiles are never used; pin their block index to the
        # diagonal tile so the pipeline does not issue an (exposed) DMA for them.
        return (b, jnp.minimum(ki, qi), 0)

    attn_cost = pl.CostEstimate(
        flops=2 * B * S * S * E + 2 * B * S * E * E,            # causal-halved attn + proj
        transcendentals=B * n_head * S * S // 2,
        bytes_accessed=itemsize * (3 * nq + 1) * B * S * E + 4 * (E * E + E))
    out = pl.pallas_call(
        functools.partial(_flash_attn_proj_kernel, n_head=n_head, tq=tq, tk=tq),
        out_shape=jax.ShapeDtypeStruct((B, S, E), dtype),
        grid=(B, nq, nq),
        in_specs=[
            pl.BlockSpec((1, tq, E), lambda b, qi, ki: (b, qi, 0)),   # Q tile
            pl.BlockSpec((1, tq, E), kv_index_map),                   # K tile
            pl.BlockSpec((1, tq, E), kv_index_map),                   # V tile
            pl.BlockSpec((E, E), lambda b, qi, ki: (0, 0)),           # W_proj (whole)
            pl.BlockSpec((1, E), lambda b, qi, ki: (0, 0)),           # b_proj
        ],
        out_specs=pl.BlockSpec((1, tq, E), lambda b, qi, ki: (b, qi, 0)),
        scratch_shapes=[
            pltpu.VMEM((n_head, tq, 1), jnp.float32),   # running max m (per head)
            pltpu.VMEM((n_head, tq, 1), jnp.float32),   # running sum l (per head)
            pltpu.VMEM((n_head, tq, D), jnp.float32),   # per-head output accumulator
            pltpu.VMEM((tq, E), jnp.float32),           # assembled attn tile (finalize)
        ],
        compiler_params=pltpu.CompilerParams(
            dimension_semantics=("parallel", "parallel", "arbitrary"),
            vmem_limit_bytes=48 * 1024 * 1024),
        cost_estimate=attn_cost,
    )(q, k, v, w_proj, b_proj2)
    return out


def _reference(x, w_attn, b_attn, w_proj, b_proj, n_head):
    """Pure-JAX reference mirroring the PyTorch forward exactly."""
    B, S, E = x.shape
    D = E // n_head
    qkv = jnp.einsum('bse,oe->bso', x, w_attn) + b_attn
    q, k, v = qkv[..., :E], qkv[..., E:2 * E], qkv[..., 2 * E:]
    q = q.reshape(B, S, n_head, D).transpose(0, 2, 1, 3)
    k = k.reshape(B, S, n_head, D).transpose(0, 2, 1, 3)
    v = v.reshape(B, S, n_head, D).transpose(0, 2, 1, 3)
    s = jnp.einsum('bhqd,bhkd->bhqk', q, k) / math.sqrt(D)
    mask = jnp.tril(jnp.ones((S, S), dtype=bool))
    s = jnp.where(mask, s, -jnp.inf)
    p = jax.nn.softmax(s, axis=-1)
    o = jnp.einsum('bhqk,bhkd->bhqd', p, v)
    o = o.transpose(0, 2, 1, 3).reshape(B, S, E)
    return jnp.einsum('bse,oe->bso', o, w_proj) + b_proj


if __name__ == "__main__":
    # Small GPT-2-ish config: batch=2, seq=8, n_embed=32, n_head=4 (head_dim=8)
    B, S, E, H = 2, 8, 32, 4

    key = jax.random.PRNGKey(0)
    kx, kwa, kba, kwp, kbp = jax.random.split(key, 5)

    x = jax.random.normal(kx, (B, S, E), dtype=jnp.float32)
    # torch.nn.Linear parameter shapes: weight (out, in), bias (out,)
    w_attn = 0.02 * jax.random.normal(kwa, (3 * E, E), dtype=jnp.float32)
    b_attn = 0.02 * jax.random.normal(kba, (3 * E,), dtype=jnp.float32)
    w_proj = 0.02 * jax.random.normal(kwp, (E, E), dtype=jnp.float32)
    b_proj = 0.02 * jax.random.normal(kbp, (E,), dtype=jnp.float32)

    out = masked_mhsa_block(x, w_attn, b_attn, w_proj, b_proj, H)
    out = jax.block_until_ready(out)

    ref = _reference(x, w_attn, b_attn, w_proj, b_proj, H)
    assert out.shape == (B, S, E)
    # tolerance accounts for the approx (EUP) reciprocal and online-softmax ordering
    assert jnp.allclose(out, ref, atol=1e-3, rtol=1e-3), "mismatch vs reference"

    print("KERNEL_OK")
</pallas_src>

<mosaic_0001>
module attributes {stable_mosaic.version = 11 : i64} {
  func.func @_qkv_proj_kernel(%arg0: i32, %arg1: i32, %arg2: memref<1x8x32xf32, #tpu.memory_space<vmem>>, %arg3: memref<96x32xf32, #tpu.memory_space<vmem>>, %arg4: memref<1x96xf32, #tpu.memory_space<vmem>>, %arg5: memref<1x8x32xf32, #tpu.memory_space<vmem>>, %arg6: memref<1x8x32xf32, #tpu.memory_space<vmem>>, %arg7: memref<1x8x32xf32, #tpu.memory_space<vmem>>) attributes {dimension_semantics = [#tpu.dimension_semantics<parallel>, #tpu.dimension_semantics<parallel>], iteration_bounds = array<i64: 2, 1>, scalar_prefetch = 0 : i64, scratch_operands = 0 : i64, tpu.core_type = #tpu.core_type<tc>, window_params = [{transform_indices = @transform_0, window_bounds = array<i64: 1, 8, 32>}, {pipeline_mode = #tpu.pipeline_mode<synchronous>, transform_indices = @transform_1, window_bounds = array<i64: 96, 32>}, {pipeline_mode = #tpu.pipeline_mode<synchronous>, transform_indices = @transform_2, window_bounds = array<i64: 1, 96>}, {transform_indices = @transform_3, window_bounds = array<i64: 1, 8, 32>}, {transform_indices = @transform_4, window_bounds = array<i64: 1, 8, 32>}, {transform_indices = @transform_5, window_bounds = array<i64: 1, 8, 32>}]} {
    %c0 = arith.constant 0 : index
    %c0_0 = arith.constant 0 : index
    %c0_1 = arith.constant 0 : index
    %0 = vector.load %arg2[%c0, %c0_0, %c0_1] : memref<1x8x32xf32, #tpu.memory_space<vmem>>, vector<1x8x32xf32>
    %1 = vector.shape_cast %0 : vector<1x8x32xf32> to vector<8x32xf32>
    %c0_2 = arith.constant 0 : index
    %c0_3 = arith.constant 0 : index
    %2 = vector.load %arg3[%c0_2, %c0_3] : memref<96x32xf32, #tpu.memory_space<vmem>>, vector<96x32xf32>
    %cst = arith.constant dense<0.000000e+00> : vector<8x96xf32>
    %3 = tpu.matmul %1, %2, %cst {dimension_numbers = #tpu.dot_dimension_numbers<[1], [1], [0], [0], [0, 0, 1, 0], [], []>} : vector<8x32xf32>, vector<96x32xf32>, vector<8x96xf32> -> vector<8x96xf32>
    %c0_4 = arith.constant 0 : index
    %c0_5 = arith.constant 0 : index
    %4 = vector.load %arg4[%c0_4, %c0_5] : memref<1x96xf32, #tpu.memory_space<vmem>>, vector<1x96xf32>
    %5 = vector.broadcast %4 : vector<1x96xf32> to vector<8x96xf32>
    %6 = arith.addf %3, %5 : vector<8x96xf32>
    %7 = vector.extract_strided_slice %6 {offsets = [0, 0], sizes = [8, 32], strides = [1, 1]} : vector<8x96xf32> to vector<8x32xf32>
    %cst_6 = arith.constant 0.353553385 : f32
    %8 = vector.broadcast %cst_6 : f32 to vector<8x32xf32>
    %9 = arith.mulf %7, %8 : vector<8x32xf32>
    %c0_7 = arith.constant 0 : index
    %c0_8 = arith.constant 0 : index
    %c0_9 = arith.constant 0 : index
    %10 = vector.load %arg5[%c0_7, %c0_8, %c0_9] : memref<1x8x32xf32, #tpu.memory_space<vmem>>, vector<1x8x32xf32>
    %11 = vector.shape_cast %10 : vector<1x8x32xf32> to vector<8x32xf32>
    %12 = vector.shape_cast %9 : vector<8x32xf32> to vector<1x8x32xf32>
    tpu.vector_store %arg5[%c0_7, %c0_8, %c0_9], %12 {strides = array<i32>} : memref<1x8x32xf32, #tpu.memory_space<vmem>>, vector<1x8x32xf32>,
    %13 = vector.extract_strided_slice %6 {offsets = [0, 32], sizes = [8, 32], strides = [1, 1]} : vector<8x96xf32> to vector<8x32xf32>
    %c0_10 = arith.constant 0 : index
    %c0_11 = arith.constant 0 : index
    %c0_12 = arith.constant 0 : index
    %14 = vector.load %arg6[%c0_10, %c0_11, %c0_12] : memref<1x8x32xf32, #tpu.memory_space<vmem>>, vector<1x8x32xf32>
    %15 = vector.shape_cast %14 : vector<1x8x32xf32> to vector<8x32xf32>
    %16 = vector.shape_cast %13 : vector<8x32xf32> to vector<1x8x32xf32>
    tpu.vector_store %arg6[%c0_10, %c0_11, %c0_12], %16 {strides = array<i32>} : memref<1x8x32xf32, #tpu.memory_space<vmem>>, vector<1x8x32xf32>,
    %17 = vector.extract_strided_slice %6 {offsets = [0, 64], sizes = [8, 32], strides = [1, 1]} : vector<8x96xf32> to vector<8x32xf32>
    %c0_13 = arith.constant 0 : index
    %c0_14 = arith.constant 0 : index
    %c0_15 = arith.constant 0 : index
    %18 = vector.load %arg7[%c0_13, %c0_14, %c0_15] : memref<1x8x32xf32, #tpu.memory_space<vmem>>, vector<1x8x32xf32>
    %19 = vector.shape_cast %18 : vector<1x8x32xf32> to vector<8x32xf32>
    %20 = vector.shape_cast %17 : vector<8x32xf32> to vector<1x8x32xf32>
    tpu.vector_store %arg7[%c0_13, %c0_14, %c0_15], %20 {strides = array<i32>} : memref<1x8x32xf32, #tpu.memory_space<vmem>>, vector<1x8x32xf32>,
    return
  }
  func.func @transform_0(%arg0: i32, %arg1: i32) -> (i32, i32, i32) {
    %c0_i32 = arith.constant 0 : i32
    %c0_i32_0 = arith.constant 0 : i32
    return %arg0, %arg1, %c0_i32 : i32, i32, i32
  }
  func.func @transform_1(%arg0: i32, %arg1: i32) -> (i32, i32) {
    %c0_i32 = arith.constant 0 : i32
    %c0_i32_0 = arith.constant 0 : i32
    %c0_i32_1 = arith.constant 0 : i32
    return %c0_i32, %c0_i32_0 : i32, i32
  }
  func.func @transform_2(%arg0: i32, %arg1: i32) -> (i32, i32) {
    %c0_i32 = arith.constant 0 : i32
    %c0_i32_0 = arith.constant 0 : i32
    %c0_i32_1 = arith.constant 0 : i32
    return %c0_i32, %c0_i32_0 : i32, i32
  }
  func.func @transform_3(%arg0: i32, %arg1: i32) -> (i32, i32, i32) {
    %c0_i32 = arith.constant 0 : i32
    %c0_i32_0 = arith.constant 0 : i32
    return %arg0, %arg1, %c0_i32 : i32, i32, i32
  }
  func.func @transform_4(%arg0: i32, %arg1: i32) -> (i32, i32, i32) {
    %c0_i32 = arith.constant 0 : i32
    %c0_i32_0 = arith.constant 0 : i32
    return %arg0, %arg1, %c0_i32 : i32, i32, i32
  }
  func.func @transform_5(%arg0: i32, %arg1: i32) -> (i32, i32, i32) {
    %c0_i32 = arith.constant 0 : i32
    %c0_i32_0 = arith.constant 0 : i32
    return %arg0, %arg1, %c0_i32 : i32, i32, i32
  }
}

</mosaic_0001>

<llo_original>
// kernel: tpu_custom_call.1
$region0: #{tpu_custom_call.1}
  #allocation0 [shape = 'u32[]', space=smem, size = 0x4, offset = 0x4, fixed_abs, tag = 'smem constant byte address 0x4 - core index']
  #allocation1 [shape = 'u32[144,128]{1,0:T(1,128)}', space=vmem, size = 0x12000, scoped, tag = 'internal scratch']
  %s0 = inlined_call_operand.hbm [shape: f32[2,8,32], index: 0, kind: input, shape index: {}]
  %s1 = inlined_call_operand.hbm [shape: f32[96,32], index: 1, kind: input, shape index: {}]
  %s2 = inlined_call_operand.hbm [shape: f32[1,96], index: 2, kind: input, shape index: {}]
  %s3 = inlined_call_operand.hbm [shape: f32[2,8,32], index: 3, kind: output, shape index: {0}]
  %s4 = inlined_call_operand.hbm [shape: f32[2,8,32], index: 4, kind: output, shape index: {1}]
  %s5 = inlined_call_operand.hbm [shape: f32[2,8,32], index: 5, kind: output, shape index: {2}]
  %6 = xla_tuple %s3, %s4, %s5
  %s7 = sld [smem:[#allocation0]]
  $region73: #{tpu_custom_call.1} parent=0
    _
  %s9 = ssub.s32 1, %s7
  %s10 = scalar_select 0, %s9, %s7
  $region1: #{tpu_custom_call.1} parent=0
    #allocation2 [shape = 'u8[8192]{0}', space=vmem, size = 0x2000, scoped, tag = 'input window, operand 0']
    #allocation3 [shape = 's32[2]{0}', space=sflag, size = 0x8, scoped, tag = 'scoped memory for tpu_custom_call.1']
    #allocation4 [shape = 's32[2]{0}', space=sflag, size = 0x8, scoped, tag = 'scoped memory for tpu_custom_call.1']
    #allocation5 [shape = 'u8[49152]{0}', space=vmem, size = 0xc000, scoped, tag = 'input window, operand 1, single buffered']
    #allocation6 [shape = 's32[1]{0}', space=sflag, size = 0x4, scoped, tag = 'scoped memory for tpu_custom_call.1']
    #allocation7 [shape = 'u8[512]{0}', space=vmem, size = 0x400, scoped, tag = 'input window, operand 2, single buffered']
    #allocation8 [shape = 'u8[8192]{0}', space=vmem, size = 0x2000, scoped, tag = 'output window, operand 0']
    #allocation9 [shape = 'u8[8192]{0}', space=vmem, size = 0x2000, scoped, tag = 'output window, operand 1']
    #allocation10 [shape = 's32[2]{0}', space=sflag, size = 0x8, scoped, tag = 'scoped memory for tpu_custom_call.1']
    #allocation11 [shape = 'u8[8192]{0}', space=vmem, size = 0x2000, scoped, tag = 'output window, operand 2']
    %11 = vsyncpa [#allocation3], 0
    %s12 = scalar_lea.sflag [#allocation3], 1
    %13 = vsyncpa %s12, 0
    %14 = vsyncpa [#allocation6], 0
    %15 = vsyncpa [#allocation4], 0
    %s16 = scalar_lea.sflag [#allocation4], 1
    %17 = vsyncpa %s16, 0
    %18 = vsyncpa [#allocation10], 0
    %s19 = scalar_lea.sflag [#allocation10], 1
    %20 = vsyncpa %s19, 0
    loop: start=0, step=1, limit=4
    $region2: #{tpu_custom_call.1} parent=1 // loop_pre_header
      _
    $region3: #{tpu_custom_call.1} parent=1 // loop_header
      %s22 = sphi 0, %s26
      %p23 = scmp.ge.s32.totalorder %s22, 4
      %s29 = sphi 0, %s41
      %s30 = sphi 0, %s37
      %s31 = sphi 0, %s29
      %s32 = sphi 0, %s30
      %s33 = sphi 0, %s31
      %s34 = sphi 0, %s32
      %s46 = sphi 0, %s48
      %s49 = sphi 0, %s46
      %s50 = sphi 0, %s49
      %s66 = sphi 0, %s50
      %s70 = sphi 0, %s70
      %s72 = sphi 0, %s70
      %s73 = sphi 0, %s72
      %s87 = sphi 0, %s73
      %s91 = sphi 0, %s91
      %s93 = sphi 0, %s91
      %s94 = sphi 0, %s93
      %s108 = sphi 0, %s94
      %s116 = sphi 0, %s118
      %s119 = sphi 0, %s116
      %s120 = sphi 0, %s119
      %s136 = sphi 0, %s120
      %s144 = sphi 0, %s146
      %s147 = sphi 0, %s144
      %s148 = sphi 0, %s147
      %s164 = sphi 0, %s148
      %s172 = sphi 0, %s174
      %s175 = sphi 0, %s172
      %s176 = sphi 0, %s175
      %s192 = sphi 0, %s176
    $region4: #{tpu_custom_call.1} parent=1 // loop_header_branch
      %25 = sbr.rel (%p23) target = $region8
    $region5: #{tpu_custom_call.1} parent=1 // loop_body
      %s27 = ssub.s32 %s22, 1
      %s28 = ssub.s32 %s22, 2
      %s35 = sadd.s32 1, %s30
      %p36 = scmp.ge.s32.totalorder %s35, 1
      %s37 = scalar_select %p36, 0, %s35
      %s38 = sadd.s32 1, %s29
      %s39 = scalar_select %p36, %s38, %s29
      %p40 = scmp.ge.s32.totalorder %s39, 2
      %s41 = scalar_select %p40, 0, %s39
      %s42 = ssub.s32 %s29, %s41
      %s43 = ssub.s32 %s30, %s37
      %s44 = sor.u32 %s42, %s43
      %p45 = scmp.eq.s32.totalorder %s44, 0
      %s47 = sadd.s32 %s46, 1
      %s48 = scalar_select %p45, %s46, %s47
      %p51 = pneg %p45
      %p52 = scmp.eq.s32.totalorder %s22, 1
      %p53 = por %p51, %p52
      %p54 = scmp.ne.s32.totalorder %s46, %s49
      %p55 = scmp.eq.s32.totalorder %s22, 0
      %p56 = por %p54, %p55
      %p57 = scmp.ne.s32.totalorder %s46, %s49
      %p58 = scmp.eq.s32.totalorder %s27, 1
      %p59 = por %p57, %p58
      %p60 = scmp.ne.s32.totalorder %s49, %s50
      %p61 = scmp.eq.s32.totalorder %s27, 0
      %p62 = por %p60, %p61
      %p63 = scmp.ne.s32.totalorder %s49, %s50
      %p64 = scmp.eq.s32.totalorder %s28, 1
      %p65 = por %p63, %p64
      %p67 = scmp.ne.s32.totalorder %s50, %s66
      %p68 = scmp.eq.s32.totalorder %s28, 0
      %p69 = por %p67, %p68
      %s71 = sadd.s32 %s70, 1
      %p74 = scmp.eq.s32.totalorder %s22, 1
      %p75 = scmp.ne.s32.totalorder %s70, %s72
      %p76 = scmp.eq.s32.totalorder %s22, 0
      %p77 = por %p75, %p76
      %p78 = scmp.ne.s32.totalorder %s70, %s72
      %p79 = scmp.eq.s32.totalorder %s27, 1
      %p80 = por %p78, %p79
      %p81 = scmp.ne.s32.totalorder %s72, %s73
      %p82 = scmp.eq.s32.totalorder %s27, 0
      %p83 = por %p81, %p82
      %p84 = scmp.ne.s32.totalorder %s72, %s73
      %p85 = scmp.eq.s32.totalorder %s28, 1
      %p86 = por %p84, %p85
      %p88 = scmp.ne.s32.totalorder %s73, %s87
      %p89 = scmp.eq.s32.totalorder %s28, 0
      %p90 = por %p88, %p89
      %s92 = sadd.s32 %s91, 1
      %p95 = scmp.eq.s32.totalorder %s22, 1
      %p96 = scmp.ne.s32.totalorder %s91, %s93
      %p97 = scmp.eq.s32.totalorder %s22, 0
      %p98 = por %p96, %p97
      %p99 = scmp.ne.s32.totalorder %s91, %s93
      %p100 = scmp.eq.s32.totalorder %s27, 1
      %p101 = por %p99, %p100
      %p102 = scmp.ne.s32.totalorder %s93, %s94
      %p103 = scmp.eq.s32.totalorder %s27, 0
      %p104 = por %p102, %p103
      %p105 = scmp.ne.s32.totalorder %s93, %s94
      %p106 = scmp.eq.s32.totalorder %s28, 1
      %p107 = por %p105, %p106
      %p109 = scmp.ne.s32.totalorder %s94, %s108
      %p110 = scmp.eq.s32.totalorder %s28, 0
      %p111 = por %p109, %p110
      %s112 = ssub.s32 %s29, %s41
      %s113 = ssub.s32 %s30, %s37
      %s114 = sor.u32 %s112, %s113
      %p115 = scmp.eq.s32.totalorder %s114, 0
      %s117 = sadd.s32 %s116, 1
      %s118 = scalar_select %p115, %s116, %s117
      %p121 = pneg %p115
      %p122 = scmp.eq.s32.totalorder %s22, 1
      %p123 = por %p121, %p122
      %p124 = scmp.ne.s32.totalorder %s116, %s119
      %p125 = scmp.eq.s32.totalorder %s22, 0
      %p126 = por %p124, %p125
      %p127 = scmp.ne.s32.totalorder %s116, %s119
      %p128 = scmp.eq.s32.totalorder %s27, 1
      %p129 = por %p127, %p128
      %p130 = scmp.ne.s32.totalorder %s119, %s120
      %p131 = scmp.eq.s32.totalorder %s27, 0
      %p132 = por %p130, %p131
      %p133 = scmp.ne.s32.totalorder %s119, %s120
      %p134 = scmp.eq.s32.totalorder %s28, 1
      %p135 = por %p133, %p134
      %p137 = scmp.ne.s32.totalorder %s120, %s136
      %p138 = scmp.eq.s32.totalorder %s28, 0
      %p139 = por %p137, %p138
      %s140 = ssub.s32 %s29, %s41
      %s141 = ssub.s32 %s30, %s37
      %s142 = sor.u32 %s140, %s141
      %p143 = scmp.eq.s32.totalorder %s142, 0
      %s145 = sadd.s32 %s144, 1
      %s146 = scalar_select %p143, %s144, %s145
      %p149 = pneg %p143
      %p150 = scmp.eq.s32.totalorder %s22, 1
      %p151 = por %p149, %p150
      %p152 = scmp.ne.s32.totalorder %s144, %s147
      %p153 = scmp.eq.s32.totalorder %s22, 0
      %p154 = por %p152, %p153
      %p155 = scmp.ne.s32.totalorder %s144, %s147
      %p156 = scmp.eq.s32.totalorder %s27, 1
      %p157 = por %p155, %p156
      %p158 = scmp.ne.s32.totalorder %s147, %s148
      %p159 = scmp.eq.s32.totalorder %s27, 0
      %p160 = por %p158, %p159
      %p161 = scmp.ne.s32.totalorder %s147, %s148
      %p162 = scmp.eq.s32.totalorder %s28, 1
      %p163 = por %p161, %p162
      %p165 = scmp.ne.s32.totalorder %s148, %s164
      %p166 = scmp.eq.s32.totalorder %s28, 0
      %p167 = por %p165, %p166
      %s168 = ssub.s32 %s29, %s41
      %s169 = ssub.s32 %s30, %s37
      %s170 = sor.u32 %s168, %s169
      %p171 = scmp.eq.s32.totalorder %s170, 0
      %s173 = sadd.s32 %s172, 1
      %s174 = scalar_select %p171, %s172, %s173
      %p177 = pneg %p171
      %p178 = scmp.eq.s32.totalorder %s22, 1
      %p179 = por %p177, %p178
      %p180 = scmp.ne.s32.totalorder %s172, %s175
      %p181 = scmp.eq.s32.totalorder %s22, 0
      %p182 = por %p180, %p181
      %p183 = scmp.ne.s32.totalorder %s172, %s175
      %p184 = scmp.eq.s32.totalorder %s27, 1
      %p185 = por %p183, %p184
      %p186 = scmp.ne.s32.totalorder %s175, %s176
      %p187 = scmp.eq.s32.totalorder %s27, 0
      %p188 = por %p186, %p187
      %p189 = scmp.ne.s32.totalorder %s175, %s176
      %p190 = scmp.eq.s32.totalorder %s28, 1
      %p191 = por %p189, %p190
      %p193 = scmp.ne.s32.totalorder %s176, %s192
      %p194 = scmp.eq.s32.totalorder %s28, 0
      %p195 = por %p193, %p194
      %p196 = scmp.le.s32.totalorder 1, %s22
      %p197 = scmp.lt.s32.totalorder %s22, 3
      %p198 = pnand %p196, %p197
      %p199 = pneg %p198
      // Predicated region
      $region9: #{tpu_custom_call.1} parent=5 // pred_check
        _
      $region10: #{tpu_custom_call.1} parent=5 // pred_check_branch
        %201 = sbr.rel (%p198) target = $region12
      $region11: #{tpu_custom_call.1} parent=5 // pred_region
        %s202 = ssub.s32 %s22, 1
        // Predicated region
        $region13: #{tpu_custom_call.1} parent=11 // pred_check
          %p203 = pneg %p83
        $region14: #{tpu_custom_call.1} parent=11 // pred_check_branch
          %205 = sbr.rel (%p203) target = $region16
        $region15: #{tpu_custom_call.1} parent=11 // pred_region
          %s207 = ssub.s32 1536, 1536
          %208 = vsyncadd [#allocation6], %s207
          %s209 = sshll.u32 [#allocation5], 4
          %s210 = int_to_ptr.vmem [resolvable:$true] %s209
          %215 = dma.hbm_to_vmem [thread:$0]  %s1, 1536, %s210, [#allocation6], 128, 128, 8
        $region16: #{tpu_custom_call.1} parent=11 // pred_fallthru
          _
        // Predicated region
        $region17: #{tpu_custom_call.1} parent=11 // pred_check
          %p216 = pneg %p104
        $region18: #{tpu_custom_call.1} parent=11 // pred_check_branch
          %218 = sbr.rel (%p216) target = $region20
        $region19: #{tpu_custom_call.1} parent=11 // pred_region
          %s220 = ssub.s32 16, 16
          %221 = vsyncadd [#allocation6], %s220
          %s223 = sshll.u32 [#allocation7], 4
          %s224 = int_to_ptr.vmem [resolvable:$true] %s223
          %226 = dma.hbm_to_vmem [thread:$0]  %s2, 16, %s224, [#allocation6]
        $region20: #{tpu_custom_call.1} parent=11 // pred_fallthru
          _
      $region12: #{tpu_custom_call.1} parent=5 // pred_fallthru
        _
      %p227 = scmp.lt.s32.totalorder %s22, 2
      // Predicated region
      $region21: #{tpu_custom_call.1} parent=5 // pred_check
        %p228 = pneg %p227
      $region22: #{tpu_custom_call.1} parent=5 // pred_check_branch
        %230 = sbr.rel (%p228) target = $region24
      $region23: #{tpu_custom_call.1} parent=5 // pred_region
        // Predicated region
        $region25: #{tpu_custom_call.1} parent=23 // pred_check
          %p231 = pneg %p56
        $region26: #{tpu_custom_call.1} parent=23 // pred_check_branch
          %233 = sbr.rel (%p231) target = $region28
        $region27: #{tpu_custom_call.1} parent=23 // pred_region
          %s234 = sand.u32 %s46, 1
          %s235 = scalar_lea.sflag [#allocation3], %s234
          %s236 = sand.u32 %s46, 1
          %s237 = smul.addr %s236, 8
          %s238 = scalar_lea.vmem [#allocation2], %s237
          %s240 = ssub.s32 128, 128
          %241 = vsyncadd %s235, %s240
          %s242 = sadd.s32 %s30, %s29
          %s243 = smul.addr %s242, 128
          %s244 = scalar_lea.hbm %s0, %s243
          %s246 = sshll.u32 %s238, 4
          %s247 = int_to_ptr.vmem [resolvable:$true] %s246
          %249 = dma.hbm_to_vmem [thread:$0]  %s244, 128, %s247, %s235
        $region28: #{tpu_custom_call.1} parent=23 // pred_fallthru
          _
      $region24: #{tpu_custom_call.1} parent=5 // pred_fallthru
        _
      %p250 = scmp.le.s32.totalorder 1, %s22
      %p251 = scmp.lt.s32.totalorder %s22, 3
      %p252 = pnand %p250, %p251
      %p253 = pneg %p252
      // Predicated region
      $region29: #{tpu_custom_call.1} parent=5 // pred_check
        _
      $region30: #{tpu_custom_call.1} parent=5 // pred_check_branch
        %255 = sbr.rel (%p252) target = $region32
      $region31: #{tpu_custom_call.1} parent=5 // pred_region
        %s256 = ssub.s32 %s22, 1
        %s257 = sand.u32 %s49, 1
        %s258 = scalar_lea.sflag [#allocation3], %s257
        %s259 = sand.u32 %s49, 1
        %s260 = smul.addr %s259, 8
        %s261 = scalar_lea.vmem [#allocation2], %s260
        // Predicated region
        $region33: #{tpu_custom_call.1} parent=31 // pred_check
          %p262 = pneg %p62
        $region34: #{tpu_custom_call.1} parent=31 // pred_check_branch
          %264 = sbr.rel (%p262) target = $region36
        $region35: #{tpu_custom_call.1} parent=31 // pred_region
          %265 = dma.done %s258, 128
        $region36: #{tpu_custom_call.1} parent=31 // pred_fallthru
          _
        // Predicated region
        $region37: #{tpu_custom_call.1} parent=31 // pred_check
          %p266 = pneg %p83
        $region38: #{tpu_custom_call.1} parent=31 // pred_check_branch
          %268 = sbr.rel (%p266) target = $region40
        $region39: #{tpu_custom_call.1} parent=31 // pred_region
          %269 = dma.done [#allocation6], 1536
        $region40: #{tpu_custom_call.1} parent=31 // pred_fallthru
          _
        // Predicated region
        $region41: #{tpu_custom_call.1} parent=31 // pred_check
          %p270 = pneg %p104
        $region42: #{tpu_custom_call.1} parent=31 // pred_check_branch
          %272 = sbr.rel (%p270) target = $region44
        $region43: #{tpu_custom_call.1} parent=31 // pred_region
          %273 = dma.done [#allocation6], 16
        $region44: #{tpu_custom_call.1} parent=31 // pred_fallthru
          _
        %s274 = sand.u32 %s49, 1
        %s275 = scalar_lea.sflag [#allocation3], %s274
        %s276 = sand.u32 %s49, 1
        %s277 = smul.addr %s276, 8
        %s278 = scalar_lea.vmem [#allocation2], %s277
        %p279 = pneg %p62
        %p280 = pneg %p59
        %p281 = pneg %p83
        %p282 = pneg %p80
        %p283 = pneg %p104
        %p284 = pneg %p101
        %p285 = pneg %p132
        %p286 = pneg %p129
        %s287 = sand.u32 %s119, 1
        %s288 = scalar_lea.sflag [#allocation4], %s287
        %s289 = sand.u32 %s119, 1
        %s290 = smul.addr %s289, 8
        %s291 = scalar_lea.vmem [#allocation8], %s290
        %p292 = pneg %p160
        %p293 = pneg %p157
        %s294 = sand.u32 %s27, 1
        %s295 = scalar_lea.sflag [#allocation10], %s294
        %s296 = sand.u32 %s147, 1
        %s297 = smul.addr %s296, 8
        %s298 = scalar_lea.vmem [#allocation9], %s297
        %p299 = pneg %p188
        %p300 = pneg %p185
        %s301 = sand.u32 %s27, 1
        %s302 = scalar_lea.sflag [#allocation10], %s301
        %s303 = sand.u32 %s175, 1
        %s304 = smul.addr %s303, 8
        %s305 = scalar_lea.vmem [#allocation11], %s304
        %v306 = vld [vmem:[%s261] sm:$0xff]
        %v307 = vld [vmem:[#allocation5] sm:$0xff]
        %v308 = vld [vmem:[#allocation5 + $0x8] sm:$0xff]
        %v309 = vld [vmem:[#allocation5 + $0x10] sm:$0xff]
        %v310 = vld [vmem:[#allocation5 + $0x18] sm:$0xff]
        %v311 = vld [vmem:[#allocation5 + $0x20] sm:$0xff]
        %v312 = vld [vmem:[#allocation5 + $0x28] sm:$0xff]
        %v313 = vld [vmem:[#allocation5 + $0x30] sm:$0xff]
        %v314 = vld [vmem:[#allocation5 + $0x38] sm:$0xff]
        %v315 = vld [vmem:[#allocation5 + $0x40] sm:$0xff]
        %v316 = vld [vmem:[#allocation5 + $0x48] sm:$0xff]
        %v317 = vld [vmem:[#allocation5 + $0x50] sm:$0xff]
        %v318 = vld [vmem:[#allocation5 + $0x58] sm:$0xff]
        %v319 = vld [vmem:[#allocation7] sm:$0x1]
        %v321 = vlaneseq
        %v322 = vshrl.u32 %v321, 7
        %v323 = vsub.s32 0, %v322
        %v324 = vrot.slane %v319, %v323
        %vm326 = vcmask 261120
        %v328 = vsel %vm326, %v306, 0
        %v331 = vsel %vm326, %v307, 0
        %v334 = vsel %vm326, %v308, 0
        %v337 = vsel %vm326, %v309, 0
        %v340 = vsel %vm326, %v310, 0
        %v343 = vsel %vm326, %v311, 0
        %v346 = vsel %vm326, %v312, 0
        %v349 = vsel %vm326, %v313, 0
        %v352 = vsel %vm326, %v314, 0
        %v355 = vsel %vm326, %v315, 0
        %v358 = vsel %vm326, %v316, 0
        %v361 = vsel %vm326, %v317, 0
        %v364 = vsel %vm326, %v318, 0
        %366 = vmatprep.subr.mxu0 0.0
        %367 = vmatpush1.xpose.msra.mxu0 %v331
        %368 = vmatprep.subr.mxu0 0.0
        %369 = vmatpush1.xpose.msra.mxu0 %v334
        %370 = vmatprep.subr.mxu0 0.0
        %371 = vmatpush1.xpose.msra.mxu0 %v337
        %372 = vmatprep.subr.mxu0 0.0
        %373 = vmatpush1.xpose.msra.mxu0 %v340
        %374 = vmatprep.subr.mxu0 0.0
        %375 = vmatpush1.xpose.msra.mxu0 %v343
        %376 = vmatprep.subr.mxu0 0.0
        %377 = vmatpush1.xpose.msra.mxu0 %v346
        %378 = vmatprep.subr.mxu0 0.0
        %379 = vmatpush1.xpose.msra.mxu0 %v349
        %380 = vmatprep.subr.mxu0 0.0
        %381 = vmatpush1.xpose.msra.mxu0 %v352
        %382 = vmatprep.subr.mxu0 0.0
        %383 = vmatpush1.xpose.msra.mxu0 %v355
        %384 = vmatprep.subr.mxu0 0.0
        %385 = vmatpush1.xpose.msra.mxu0 %v358
        %386 = vmatprep.subr.mxu0 0.0
        %387 = vmatpush1.xpose.msra.mxu0 %v361
        %388 = vmatprep.subr.mxu0 0.0
        %389 = vmatpush1.xpose.msra.mxu0 %v364
        %390 = vmatprep.subr.mxu0 0.0
        %391 = vmatpush1.xpose.msra.mxu0 0.0
        %392 = vmatprep.subr.mxu0 0.0
        %393 = vmatpush1.xpose.msra.mxu0 0.0
        %394 = vmatprep.subr.mxu0 0.0
        %395 = vmatpush1.xpose.msra.mxu0 0.0
        %396 = vmatprep.subr.mxu0 0.0
        %397 = vmatpush1.xpose.msra.mxu0 0.0
        %398 = vmatprep.subr.mxu0 0.0
        %399 = vmatpush1.xpose.msra.mxu0 0.0
        %400 = vmatprep.subr.mxu0 0.0
        %401 = vmatpush1.xpose.msra.mxu0 0.0
        %402 = vmatprep.subr.mxu0 0.0
        %403 = vmatpush1.xpose.msra.mxu0 0.0
        %404 = vmatprep.subr.mxu0 0.0
        %405 = vmatpush1.xpose.msra.mxu0 0.0
        %406 = vmatprep.subr.mxu0 0.0
        %407 = vmatpush1.xpose.msra.mxu0 0.0
        %408 = vmatprep.subr.mxu0 0.0
        %409 = vmatpush1.xpose.msra.mxu0 0.0
        %410 = vmatprep.subr.mxu0 0.0
        %411 = vmatpush1.xpose.msra.mxu0 0.0
        %412 = vmatprep.subr.mxu0 0.0
        %413 = vmatpush1.xpose.msra.mxu0 0.0
        %414 = vmatprep.subr.mxu0 0.0
        %415 = vmatpush1.xpose.msra.mxu0 0.0
        %416 = vmatprep.subr.mxu0 0.0
        %417 = vmatpush1.xpose.msra.mxu0 0.0
        %418 = vmatprep.subr.mxu0 0.0
        %419 = vmatpush1.xpose.msra.mxu0 0.0
        %420 = vmatprep.subr.mxu0 0.0
        %421 = vmatpush1.xpose.msra.mxu0 0.0
        %422 = vmatprep.subr.mxu0 0.0
        %423 = vmatpush1.xpose.msra.mxu0 0.0
        %424 = vmatprep.subr.mxu0 0.0
        %425 = vmatpush1.xpose.msra.mxu0 0.0
        %426 = vmatprep.subr.mxu0 0.0
        %427 = vmatpush1.xpose.msra.mxu0 0.0
        %428 = vmatprep.subr.mxu0 0.0
        %429 = vmatpush1.xpose.msra.mxu0 0.0
        %430 = vmatprep.mubr.f32.mxu0 0.0
        %431 = vmatmul.mubr.f32.gmra.mrb[0].mxu0 %v328
        %v432 = vpop.f32.mrb[0].mxu0
        %v433 = vadd.f32 %v324, %v432
        %v434 = vpop.f32.mrb[0].mxu0
        %435 = vdwg.mxu0
        %v436 = vmul.f32 %v433, 0.35355338
        %437 = vst.msk [vmem:[%s291] sm:$0xff] %vm326, %v436
        %439 = vrot.lane.b32.xlu0 %v433, 96
        %v440 = vpop.permute.xlu0 %439
        %442 = vst.msk [vmem:[%s298] sm:$0xff] %vm326, %v440
        %443 = vrot.lane.b32.xlu0 %v433, 64
        %v444 = vpop.permute.xlu0 %443
        %446 = vst.msk [vmem:[%s305] sm:$0xff] %vm326, %v444
        %s447 = sand.u32 %s119, 1
        %s448 = scalar_lea.sflag [#allocation4], %s447
        %s449 = sand.u32 %s119, 1
        %s450 = smul.addr %s449, 8
        %s451 = scalar_lea.vmem [#allocation8], %s450
        %s452 = sand.u32 %s27, 1
        %s453 = scalar_lea.sflag [#allocation10], %s452
        %s454 = sand.u32 %s147, 1
        %s455 = smul.addr %s454, 8
        %s456 = scalar_lea.vmem [#allocation9], %s455
        %s457 = sand.u32 %s27, 1
        %s458 = scalar_lea.sflag [#allocation10], %s457
        %s459 = sand.u32 %s175, 1
        %s460 = smul.addr %s459, 8
        %s461 = scalar_lea.vmem [#allocation11], %s460
        // Predicated region
        $region45: #{tpu_custom_call.1} parent=31 // pred_check
          %p462 = pneg %p129
        $region46: #{tpu_custom_call.1} parent=31 // pred_check_branch
          %464 = sbr.rel (%p462) target = $region48
        $region47: #{tpu_custom_call.1} parent=31 // pred_region
          %s466 = ssub.s32 128, 128
          %467 = vsyncadd %s448, %s466
          %s468 = sadd.s32 %s32, %s31
          %s469 = smul.addr %s468, 128
          %s470 = scalar_lea.hbm %s3, %s469
          %s472 = sshll.u32 %s451, 4
          %s473 = int_to_ptr.vmem [resolvable:$true] %s472
          %475 = dma.vmem_to_hbm [thread:$0]  %s473, 128, %s470, %s448
        $region48: #{tpu_custom_call.1} parent=31 // pred_fallthru
          _
        // Predicated region
        $region49: #{tpu_custom_call.1} parent=31 // pred_check
          %p476 = pneg %p157
        $region50: #{tpu_custom_call.1} parent=31 // pred_check_branch
          %478 = sbr.rel (%p476) target = $region52
        $region51: #{tpu_custom_call.1} parent=31 // pred_region
          %s480 = ssub.s32 128, 128
          %481 = vsyncadd %s453, %s480
          %s482 = sadd.s32 %s32, %s31
          %s483 = smul.addr %s482, 128
          %s484 = scalar_lea.hbm %s4, %s483
          %s486 = sshll.u32 %s456, 4
          %s487 = int_to_ptr.vmem [resolvable:$true] %s486
          %489 = dma.vmem_to_hbm [thread:$0]  %s487, 128, %s484, %s453
        $region52: #{tpu_custom_call.1} parent=31 // pred_fallthru
          _
        // Predicated region
        $region53: #{tpu_custom_call.1} parent=31 // pred_check
          %p490 = pneg %p185
        $region54: #{tpu_custom_call.1} parent=31 // pred_check_branch
          %492 = sbr.rel (%p490) target = $region56
        $region55: #{tpu_custom_call.1} parent=31 // pred_region
          %s494 = ssub.s32 128, 128
          %495 = vsyncadd %s458, %s494
          %s496 = sadd.s32 %s32, %s31
          %s497 = smul.addr %s496, 128
          %s498 = scalar_lea.hbm %s5, %s497
          %s500 = sshll.u32 %s461, 4
          %s501 = int_to_ptr.vmem [resolvable:$true] %s500
          %503 = dma.vmem_to_hbm [thread:$0]  %s501, 128, %s498, %s458
        $region56: #{tpu_custom_call.1} parent=31 // pred_fallthru
          _
      $region32: #{tpu_custom_call.1} parent=5 // pred_fallthru
        _
      %p504 = scmp.le.s32.totalorder 2, %s22
      // Predicated region
      $region57: #{tpu_custom_call.1} parent=5 // pred_check
        %p505 = pneg %p504
      $region58: #{tpu_custom_call.1} parent=5 // pred_check_branch
        %507 = sbr.rel (%p505) target = $region60
      $region59: #{tpu_custom_call.1} parent=5 // pred_region
        %s508 = ssub.s32 %s22, 2
        // Predicated region
        $region61: #{tpu_custom_call.1} parent=59 // pred_check
          %p509 = pneg %p135
        $region62: #{tpu_custom_call.1} parent=59 // pred_check_branch
          %511 = sbr.rel (%p509) target = $region64
        $region63: #{tpu_custom_call.1} parent=59 // pred_region
          %s512 = sand.u32 %s120, 1
          %s513 = scalar_lea.sflag [#allocation4], %s512
          %s514 = sand.u32 %s120, 1
          %s515 = smul.addr %s514, 8
          %s516 = scalar_lea.vmem [#allocation8], %s515
          %517 = dma.done %s513, 128
        $region64: #{tpu_custom_call.1} parent=59 // pred_fallthru
          _
        // Predicated region
        $region65: #{tpu_custom_call.1} parent=59 // pred_check
          %p518 = pneg %p163
        $region66: #{tpu_custom_call.1} parent=59 // pred_check_branch
          %520 = sbr.rel (%p518) target = $region68
        $region67: #{tpu_custom_call.1} parent=59 // pred_region
          %s521 = sand.u32 %s28, 1
          %s522 = scalar_lea.sflag [#allocation10], %s521
          %s523 = sand.u32 %s148, 1
          %s524 = smul.addr %s523, 8
          %s525 = scalar_lea.vmem [#allocation9], %s524
          %526 = dma.done %s522, 128
        $region68: #{tpu_custom_call.1} parent=59 // pred_fallthru
          _
        // Predicated region
        $region69: #{tpu_custom_call.1} parent=59 // pred_check
          %p527 = pneg %p191
        $region70: #{tpu_custom_call.1} parent=59 // pred_check_branch
          %529 = sbr.rel (%p527) target = $region72
        $region71: #{tpu_custom_call.1} parent=59 // pred_region
          %s530 = sand.u32 %s28, 1
          %s531 = scalar_lea.sflag [#allocation10], %s530
          %s532 = sand.u32 %s176, 1
          %s533 = smul.addr %s532, 8
          %s534 = scalar_lea.vmem [#allocation11], %s533
          %535 = dma.done %s531, 128
        $region72: #{tpu_custom_call.1} parent=59 // pred_fallthru
          _
      $region60: #{tpu_custom_call.1} parent=5 // pred_fallthru
        _
    $region6: #{tpu_custom_call.1} parent=1 // loop_footer
      %s26 = sadd.s32 1, %s22
    $region7: #{tpu_custom_call.1} parent=1 // loop_footer_branch
      %21 = sbr.rel target = $region3
    $region8: #{tpu_custom_call.1} parent=1 // loop_exit
      _
    %536 = vsyncpa [#allocation3], 1
    %s537 = scalar_lea.sflag [#allocation3], 1
    %538 = vsyncpa %s537, 1
    %539 = vsyncpa [#allocation6], 1
    %540 = vsyncpa [#allocation4], 1
    %s541 = scalar_lea.sflag [#allocation4], 1
    %542 = vsyncpa %s541, 1
    %543 = vsyncpa [#allocation10], 1
    %s544 = scalar_lea.sflag [#allocation10], 1
    %545 = vsyncpa %s544, 1

</llo_original>
